<compile_context>
chip_gen: v6e
topology: v6e:2x2x1
jax: 0.10.0
libtpu: 0.0.40
codegen_flags: <defaults>
</compile_context>

<pallas_src>
import functools
import numpy as np
import jax
import jax.numpy as jnp
from jax.experimental import pallas as pl
from jax.experimental.pallas import tpu as pltpu


def _bilinear_matrix(in_size: int, scale: int) -> np.ndarray:
    """Row-interpolation matrix replicating F.interpolate(mode='bilinear',
    align_corners=False) along one axis. Shape: (in_size*scale, in_size)."""
    out_size = in_size * scale
    m = np.zeros((out_size, in_size), dtype=np.float32)
    for i in range(out_size):
        src = (i + 0.5) / scale - 0.5
        src = max(src, 0.0)                      # PyTorch clamps negative src to 0
        i0 = min(int(np.floor(src)), in_size - 1)
        i1 = min(i0 + 1, in_size - 1)
        frac = src - i0
        m[i, i0] += 1.0 - frac
        m[i, i1] += frac
    return m


def _pick_c_chunk(C: int, HW: int, target_bytes: int = 2 << 20) -> int:
    """Chunk the channel (contraction) axis so one input block stays ~<= 2 MiB.
    Chunks are multiples of 128 that divide C so all BlockSpecs stay tile-aligned;
    otherwise fall back to the whole C (no chunking)."""
    if C * HW * 4 <= target_bytes:
        return C
    ck = min(C, max(128, (target_bytes // (HW * 4)) // 128 * 128))
    while ck >= 128:
        if C % ck == 0:
            return ck
        ck -= 128
    return C


# ------------------------- fused conv + combine + upsample kernel -------------------------
def _fused_mask_classifier_kernel(bias_ref, w_ref, x_ref, uh_ref, uwT_ref, out_ref,
                                  taps_ref, y2d_ref, *, H, W):
    k = pl.program_id(1)
    nk = pl.num_programs(1)
    HW = H * W

    # ---- channel contraction for this C chunk: (9, Ck) @ (Ck, HW) on the MXU ----
    part = jnp.dot(w_ref[...], x_ref[0], preferred_element_type=jnp.float32)

    @pl.when(k == 0)
    def _():
        taps_ref[...] = jnp.zeros_like(taps_ref)

    taps_ref[...] += part

    # ---- finalize on the last chunk: combine taps, add bias, bilinear x4 upsample ----
    @pl.when(k == nk - 1)
    def _():
        taps = taps_ref[...]                                  # (9, HW) f32, lane-dense

        # boundary masks implementing the conv's zero padding (flat layout)
        idx = jax.lax.broadcasted_iota(jnp.int32, (1, HW), 1)
        col = idx % W
        row_ok_top = idx >= W                                 # row > 0
        row_ok_bot = idx < (H - 1) * W                        # row < H-1
        col_ok_left = col > 0                                 # col > 0
        col_ok_right = col < (W - 1)                          # col < W-1

        # y[p] = sum_k taps[k, p + off_k] (zero outside the image); shifts via XLU rolls.
        acc = taps[4:5, :]                                    # center tap (dy=1, dx=1)
        for kk in range(9):
            if kk == 4:
                continue
            dy, dx = divmod(kk, 3)
            off = (dy - 1) * W + (dx - 1)
            shifted = pltpu.roll(taps[kk:kk + 1, :], shift=(-off) % HW, axis=1)
            valid = None
            for cond in ((row_ok_top if dy == 0 else None),
                         (row_ok_bot if dy == 2 else None),
                         (col_ok_left if dx == 0 else None),
                         (col_ok_right if dx == 2 else None)):
                if cond is not None:
                    valid = cond if valid is None else jnp.logical_and(valid, cond)
            acc = acc + jnp.where(valid, shifted, 0.0)
        acc = acc + bias_ref[0]                               # conv bias (SMEM scalar)

        # unflatten (1, HW) -> (H, W): H static row slices/stores (16 KB at real shape)
        for i in range(H):
            y2d_ref[i:i + 1, :] = acc[:, i * W:(i + 1) * W]

        # bilinear x4 upsample == Uh @ y @ Uw^T  (two MXU matmuls, f32 accumulate)
        t = jnp.dot(uh_ref[...], y2d_ref[...], preferred_element_type=jnp.float32)   # (Ho, W)
        up = jnp.dot(t, uwT_ref[...], preferred_element_type=jnp.float32)            # (Ho, Wo)
        out_ref[0, 0] = up.astype(out_ref.dtype)


@functools.partial(jax.jit, static_argnames=("scale",))
def mask_classifier_forward(x, weight, bias, scale=4):
    """x: (B, C, H, W) f32; weight: (1, C, 3, 3); bias: (1,). Returns (B, 1, 4H, 4W)."""
    B, C, H, W = x.shape
    Ho, Wo = H * scale, W * scale
    HW = H * W
    Ck = _pick_c_chunk(C, HW)
    K = C // Ck

    # glue (all cheap / layout-only): lane-dense contiguous view of x, (9, C) tap-weight matrix,
    # bias scalar, separable interpolation matrices.
    x_flat = x.reshape(B, C, HW)                                        # free (contiguous)
    w9c = jnp.transpose(weight.reshape(C, 3, 3), (1, 2, 0)).reshape(9, C).astype(jnp.float32)
    bias_f = bias.reshape(1).astype(jnp.float32)
    uh = jnp.asarray(_bilinear_matrix(H, scale))                        # (Ho, H)
    uwT = jnp.asarray(_bilinear_matrix(W, scale).T)                     # (W, Wo)

    kernel = functools.partial(_fused_mask_classifier_kernel, H=H, W=W)
    out = pl.pallas_call(
        kernel,
        out_shape=jax.ShapeDtypeStruct((B, 1, Ho, Wo), x.dtype),
        grid=(B, K),
        in_specs=[
            pl.BlockSpec(memory_space=pltpu.MemorySpace.SMEM),          # bias scalar
            pl.BlockSpec((9, Ck), lambda b, k: (0, k)),                 # tap-weight chunk
            pl.BlockSpec((1, Ck, HW), lambda b, k: (b, k, 0)),          # lane-dense input chunk
            pl.BlockSpec((Ho, H), lambda b, k: (0, 0)),                 # row upsample matrix
            pl.BlockSpec((W, Wo), lambda b, k: (0, 0)),                 # col upsample matrix^T
        ],
        out_specs=pl.BlockSpec((1, 1, Ho, Wo), lambda b, k: (b, 0, 0, 0)),
        scratch_shapes=[
            pltpu.VMEM((9, HW), jnp.float32),                           # tap-plane accumulator
            pltpu.VMEM((H, W), jnp.float32),                            # combined conv plane
        ],
        compiler_params=pltpu.CompilerParams(
            dimension_semantics=("parallel", "arbitrary"),
            vmem_limit_bytes=32 * 1024 * 1024),
        cost_estimate=pl.CostEstimate(
            flops=2 * B * 9 * C * HW + B * (2 * Ho * H * W + 2 * Ho * W * Wo),
            transcendentals=0,
            bytes_accessed=4 * (B * C * HW + 9 * C + Ho * H + W * Wo)
                           + B * Ho * Wo * x.dtype.itemsize),
    )(bias_f, w9c, x_flat, uh, uwT)
    return out


def _reference(x, weight, bias, scale=4):
    """Pure-JAX reference (conv verified independently via lax.conv)."""
    y = jax.lax.conv_general_dilated(
        x, weight, window_strides=(1, 1), padding=((1, 1), (1, 1)),
        dimension_numbers=("NCHW", "OIHW", "NCHW"))
    y = y + bias.reshape(1, 1, 1, 1)
    B, _, H, W = y.shape
    uh = jnp.asarray(_bilinear_matrix(H, scale))
    uw = jnp.asarray(_bilinear_matrix(W, scale))
    return jnp.einsum("oh,bchw,pw->bcop", uh, y, uw)


if __name__ == "__main__":
    key = jax.random.PRNGKey(0)
    kx, kw, kb = jax.random.split(key, 3)

    B, C, H, W = 2, 8, 16, 16              # small stand-in for (B, 256, 64, 64)
    x = jax.random.normal(kx, (B, C, H, W), jnp.float32)
    weight = jax.random.normal(kw, (1, C, 3, 3), jnp.float32) * 0.1   # Conv2d(C, 1, 3)
    bias = jax.random.normal(kb, (1,), jnp.float32) * 0.1

    out = jax.block_until_ready(mask_classifier_forward(x, weight, bias))
    assert out.shape == (B, 1, 4 * H, 4 * W)

    ref = jax.block_until_ready(_reference(x, weight, bias))
    np.testing.assert_allclose(np.asarray(out), np.asarray(ref), rtol=1e-4, atol=1e-4)

    print("KERNEL_OK")
</pallas_src>

<mosaic_0001>
module attributes {stable_mosaic.version = 11 : i64} {
  func.func @_fused_mask_classifier_kernel(%arg0: i32, %arg1: i32, %arg2: memref<1xf32, #tpu.memory_space<smem>>, %arg3: memref<9x8xf32, #tpu.memory_space<vmem>>, %arg4: memref<1x8x256xf32, #tpu.memory_space<vmem>>, %arg5: memref<64x16xf32, #tpu.memory_space<vmem>>, %arg6: memref<16x64xf32, #tpu.memory_space<vmem>>, %arg7: memref<1x1x64x64xf32, #tpu.memory_space<vmem>>, %arg8: memref<9x256xf32, #tpu.memory_space<vmem>>, %arg9: memref<16x16xf32, #tpu.memory_space<vmem>>) attributes {dimension_semantics = [#tpu.dimension_semantics<parallel>, #tpu.dimension_semantics<arbitrary>], iteration_bounds = array<i64: 2, 1>, scalar_prefetch = 0 : i64, scratch_operands = 2 : i64, tpu.core_type = #tpu.core_type<tc>, window_params = [{transform_indices = @transform_0, window_bounds = array<i64: 1>}, {transform_indices = @transform_1, window_bounds = array<i64: 9, 8>}, {transform_indices = @transform_2, window_bounds = array<i64: 1, 8, 256>}, {pipeline_mode = #tpu.pipeline_mode<synchronous>, transform_indices = @transform_3, window_bounds = array<i64: 64, 16>}, {pipeline_mode = #tpu.pipeline_mode<synchronous>, transform_indices = @transform_4, window_bounds = array<i64: 16, 64>}, {transform_indices = @transform_5, window_bounds = array<i64: 1, 1, 64, 64>}]} {
    %c0 = arith.constant 0 : index
    %c0_0 = arith.constant 0 : index
    %0 = vector.load %arg3[%c0, %c0_0] : memref<9x8xf32, #tpu.memory_space<vmem>>, vector<9x8xf32>
    %c0_1 = arith.constant 0 : index
    %c0_2 = arith.constant 0 : index
    %c0_3 = arith.constant 0 : index
    %1 = vector.load %arg4[%c0_1, %c0_2, %c0_3] : memref<1x8x256xf32, #tpu.memory_space<vmem>>, vector<1x8x256xf32>
    %2 = vector.shape_cast %1 : vector<1x8x256xf32> to vector<8x256xf32>
    %cst = arith.constant dense<0.000000e+00> : vector<9x256xf32>
    %3 = tpu.matmul %0, %2, %cst {dimension_numbers = #tpu.dot_dimension_numbers<[1], [0], [0], [1], [0, 0, 1, 1], [], []>} : vector<9x8xf32>, vector<8x256xf32>, vector<9x256xf32> -> vector<9x256xf32>
    %c0_i32 = arith.constant 0 : i32
    %4 = arith.cmpi eq, %arg1, %c0_i32 : i32
    %5 = arith.extui %4 : i1 to i32
    %c0_i32_4 = arith.constant 0 : i32
    %6 = arith.cmpi ne, %5, %c0_i32_4 : i32
    scf.if %6 {
      %cst_11 = arith.constant 0.000000e+00 : f32
      %13 = vector.broadcast %cst_11 : f32 to vector<9x256xf32>
      %c0_12 = arith.constant 0 : index
      %c0_13 = arith.constant 0 : index
      %14 = vector.load %arg8[%c0_12, %c0_13] : memref<9x256xf32, #tpu.memory_space<vmem>>, vector<9x256xf32>
      tpu.vector_store %arg8[%c0_12, %c0_13], %13 {strides = array<i32>} : memref<9x256xf32, #tpu.memory_space<vmem>>, vector<9x256xf32>,
    } else {
    }
    %c0_5 = arith.constant 0 : index
    %c0_6 = arith.constant 0 : index
    %7 = vector.load %arg8[%c0_5, %c0_6] : memref<9x256xf32, #tpu.memory_space<vmem>>, vector<9x256xf32>
    %8 = arith.addf %7, %3 : vector<9x256xf32>
    %c0_7 = arith.constant 0 : index
    %c0_8 = arith.constant 0 : index
    %9 = vector.load %arg8[%c0_7, %c0_8] : memref<9x256xf32, #tpu.memory_space<vmem>>, vector<9x256xf32>
    tpu.vector_store %arg8[%c0_7, %c0_8], %8 {strides = array<i32>} : memref<9x256xf32, #tpu.memory_space<vmem>>, vector<9x256xf32>,
    %c0_i32_9 = arith.constant 0 : i32
    %10 = arith.cmpi eq, %arg1, %c0_i32_9 : i32
    %11 = arith.extui %10 : i1 to i32
    %c0_i32_10 = arith.constant 0 : i32
    %12 = arith.cmpi ne, %11, %c0_i32_10 : i32
    scf.if %12 {
      %c0_11 = arith.constant 0 : index
      %c0_12 = arith.constant 0 : index
      %13 = vector.load %arg8[%c0_11, %c0_12] : memref<9x256xf32, #tpu.memory_space<vmem>>, vector<9x256xf32>
      %14 = tpu.iota {dimensions = array<i32: 1>} : vector<1x256xi32>
      %c16_i32 = arith.constant 16 : i32
      %c0_i32_13 = arith.constant 0 : i32
      %15 = arith.cmpi eq, %c16_i32, %c0_i32_13 : i32
      %c1_i32 = arith.constant 1 : i32
      %16 = arith.select %15, %c1_i32, %c16_i32 : i32
      %17 = vector.broadcast %16 : i32 to vector<1x256xi32>
      %18 = arith.remsi %14, %17 : vector<1x256xi32>
      %c0_i32_14 = arith.constant 0 : i32
      %19 = vector.broadcast %c0_i32_14 : i32 to vector<1x256xi32>
      %20 = arith.cmpi ne, %18, %19 : vector<1x256xi32>
      %c0_i32_15 = arith.constant 0 : i32
      %21 = vector.broadcast %c0_i32_15 : i32 to vector<1x256xi32>
      %22 = arith.cmpi slt, %18, %21 : vector<1x256xi32>
      %c0_i32_16 = arith.constant 0 : i32
      %23 = arith.cmpi slt, %16, %c0_i32_16 : i32
      %24 = vector.broadcast %23 : i1 to vector<1x256xi1>
      %25 = vector.broadcast %24 : vector<1x256xi1> to vector<1x256xi1>
      %26 = arith.xori %22, %25 : vector<1x256xi1>
      %27 = arith.andi %26, %20 : vector<1x256xi1>
      %28 = vector.broadcast %16 : i32 to vector<1x256xi32>
      %29 = arith.addi %18, %28 : vector<1x256xi32>
      %30 = arith.select %27, %29, %18 : vector<1x256xi1>, vector<1x256xi32>
      %c16_i32_17 = arith.constant 16 : i32
      %31 = vector.broadcast %c16_i32_17 : i32 to vector<1x256xi32>
      %32 = arith.cmpi sge, %14, %31 : vector<1x256xi32>
      %c240_i32 = arith.constant 240 : i32
      %33 = vector.broadcast %c240_i32 : i32 to vector<1x256xi32>
      %34 = arith.cmpi slt, %14, %33 : vector<1x256xi32>
      %c0_i32_18 = arith.constant 0 : i32
      %35 = vector.broadcast %c0_i32_18 : i32 to vector<1x256xi32>
      %36 = arith.cmpi sgt, %30, %35 : vector<1x256xi32>
      %c15_i32 = arith.constant 15 : i32
      %37 = vector.broadcast %c15_i32 : i32 to vector<1x256xi32>
      %38 = arith.cmpi slt, %30, %37 : vector<1x256xi32>
      %39 = vector.extract_strided_slice %13 {offsets = [4, 0], sizes = [1, 256], strides = [1, 1]} : vector<9x256xf32> to vector<1x256xf32>
      %40 = vector.extract_strided_slice %13 {offsets = [0, 0], sizes = [1, 256], strides = [1, 1]} : vector<9x256xf32> to vector<1x256xf32>
      %c17_i32 = arith.constant 17 : i32
      %41 = tpu.dynamic_rotate %40 by %c17_i32 dim 1 : vector<1x256xf32>, i32 -> vector<1x256xf32>
      %42 = arith.andi %32, %36 : vector<1x256xi1>
      %cst_19 = arith.constant 0.000000e+00 : f32
      %43 = vector.broadcast %cst_19 : f32 to vector<1x256xf32>
      %44 = arith.select %42, %41, %43 : vector<1x256xi1>, vector<1x256xf32>
      %45 = arith.addf %39, %44 : vector<1x256xf32>
      %46 = vector.extract_strided_slice %13 {offsets = [1, 0], sizes = [1, 256], strides = [1, 1]} : vector<9x256xf32> to vector<1x256xf32>
      %c16_i32_20 = arith.constant 16 : i32
      %47 = tpu.dynamic_rotate %46 by %c16_i32_20 dim 1 : vector<1x256xf32>, i32 -> vector<1x256xf32>
      %cst_21 = arith.constant 0.000000e+00 : f32
      %48 = vector.broadcast %cst_21 : f32 to vector<1x256xf32>
      %49 = arith.select %32, %47, %48 : vector<1x256xi1>, vector<1x256xf32>
      %50 = arith.addf %45, %49 : vector<1x256xf32>
      %51 = vector.extract_strided_slice %13 {offsets = [2, 0], sizes = [1, 256], strides = [1, 1]} : vector<9x256xf32> to vector<1x256xf32>
      %c15_i32_22 = arith.constant 15 : i32
      %52 = tpu.dynamic_rotate %51 by %c15_i32_22 dim 1 : vector<1x256xf32>, i32 -> vector<1x256xf32>
      %53 = arith.andi %32, %38 : vector<1x256xi1>
      %cst_23 = arith.constant 0.000000e+00 : f32
      %54 = vector.broadcast %cst_23 : f32 to vector<1x256xf32>
      %55 = arith.select %53, %52, %54 : vector<1x256xi1>, vector<1x256xf32>
      %56 = arith.addf %50, %55 : vector<1x256xf32>
      %57 = vector.extract_strided_slice %13 {offsets = [3, 0], sizes = [1, 256], strides = [1, 1]} : vector<9x256xf32> to vector<1x256xf32>
      %c1_i32_24 = arith.constant 1 : i32
      %58 = tpu.dynamic_rotate %57 by %c1_i32_24 dim 1 : vector<1x256xf32>, i32 -> vector<1x256xf32>
      %cst_25 = arith.constant 0.000000e+00 : f32
      %59 = vector.broadcast %cst_25 : f32 to vector<1x256xf32>
      %60 = arith.select %36, %58, %59 : vector<1x256xi1>, vector<1x256xf32>
      %61 = arith.addf %56, %60 : vector<1x256xf32>
      %62 = vector.extract_strided_slice %13 {offsets = [5, 0], sizes = [1, 256], strides = [1, 1]} : vector<9x256xf32> to vector<1x256xf32>
      %c255_i32 = arith.constant 255 : i32
      %63 = tpu.dynamic_rotate %62 by %c255_i32 dim 1 : vector<1x256xf32>, i32 -> vector<1x256xf32>
      %cst_26 = arith.constant 0.000000e+00 : f32
      %64 = vector.broadcast %cst_26 : f32 to vector<1x256xf32>
      %65 = arith.select %38, %63, %64 : vector<1x256xi1>, vector<1x256xf32>
      %66 = arith.addf %61, %65 : vector<1x256xf32>
      %67 = vector.extract_strided_slice %13 {offsets = [6, 0], sizes = [1, 256], strides = [1, 1]} : vector<9x256xf32> to vector<1x256xf32>
      %c241_i32 = arith.constant 241 : i32
      %68 = tpu.dynamic_rotate %67 by %c241_i32 dim 1 : vector<1x256xf32>, i32 -> vector<1x256xf32>
      %69 = arith.andi %34, %36 : vector<1x256xi1>
      %cst_27 = arith.constant 0.000000e+00 : f32
      %70 = vector.broadcast %cst_27 : f32 to vector<1x256xf32>
      %71 = arith.select %69, %68, %70 : vector<1x256xi1>, vector<1x256xf32>
      %72 = arith.addf %66, %71 : vector<1x256xf32>
      %73 = vector.extract_strided_slice %13 {offsets = [7, 0], sizes = [1, 256], strides = [1, 1]} : vector<9x256xf32> to vector<1x256xf32>
      %c240_i32_28 = arith.constant 240 : i32
      %74 = tpu.dynamic_rotate %73 by %c240_i32_28 dim 1 : vector<1x256xf32>, i32 -> vector<1x256xf32>
      %cst_29 = arith.constant 0.000000e+00 : f32
      %75 = vector.broadcast %cst_29 : f32 to vector<1x256xf32>
      %76 = arith.select %34, %74, %75 : vector<1x256xi1>, vector<1x256xf32>
      %77 = arith.addf %72, %76 : vector<1x256xf32>
      %78 = vector.extract_strided_slice %13 {offsets = [8, 0], sizes = [1, 256], strides = [1, 1]} : vector<9x256xf32> to vector<1x256xf32>
      %c239_i32 = arith.constant 239 : i32
      %79 = tpu.dynamic_rotate %78 by %c239_i32 dim 1 : vector<1x256xf32>, i32 -> vector<1x256xf32>
      %80 = arith.andi %34, %38 : vector<1x256xi1>
      %cst_30 = arith.constant 0.000000e+00 : f32
      %81 = vector.broadcast %cst_30 : f32 to vector<1x256xf32>
      %82 = arith.select %80, %79, %81 : vector<1x256xi1>, vector<1x256xf32>
      %83 = arith.addf %77, %82 : vector<1x256xf32>
      %c0_31 = arith.constant 0 : index
      %84 = memref.load %arg2[%c0_31] : memref<1xf32, #tpu.memory_space<smem>>
      %85 = vector.broadcast %84 : f32 to vector<1x256xf32>
      %86 = arith.addf %83, %85 : vector<1x256xf32>
      %87 = vector.extract_strided_slice %86 {offsets = [0, 0], sizes = [1, 16], strides = [1, 1]} : vector<1x256xf32> to vector<1x16xf32>
      %c0_32 = arith.constant 0 : index
      %c0_33 = arith.constant 0 : index
      %88 = vector.load %arg9[%c0_32, %c0_33] : memref<16x16xf32, #tpu.memory_space<vmem>>, vector<1x16xf32>
      tpu.vector_store %arg9[%c0_32, %c0_33], %87 {strides = array<i32>} : memref<16x16xf32, #tpu.memory_space<vmem>>, vector<1x16xf32>,
      %89 = vector.extract_strided_slice %86 {offsets = [0, 16], sizes = [1, 16], strides = [1, 1]} : vector<1x256xf32> to vector<1x16xf32>
      %c1 = arith.constant 1 : index
      %c0_34 = arith.constant 0 : index
      %90 = vector.load %arg9[%c1, %c0_34] : memref<16x16xf32, #tpu.memory_space<vmem>>, vector<1x16xf32>
      tpu.vector_store %arg9[%c1, %c0_34], %89 {strides = array<i32>} : memref<16x16xf32, #tpu.memory_space<vmem>>, vector<1x16xf32>,
      %91 = vector.extract_strided_slice %86 {offsets = [0, 32], sizes = [1, 16], strides = [1, 1]} : vector<1x256xf32> to vector<1x16xf32>
      %c2 = arith.constant 2 : index
      %c0_35 = arith.constant 0 : index
      %92 = vector.load %arg9[%c2, %c0_35] : memref<16x16xf32, #tpu.memory_space<vmem>>, vector<1x16xf32>
      tpu.vector_store %arg9[%c2, %c0_35], %91 {strides = array<i32>} : memref<16x16xf32, #tpu.memory_space<vmem>>, vector<1x16xf32>,
      %93 = vector.extract_strided_slice %86 {offsets = [0, 48], sizes = [1, 16], strides = [1, 1]} : vector<1x256xf32> to vector<1x16xf32>
      %c3 = arith.constant 3 : index
      %c0_36 = arith.constant 0 : index
      %94 = vector.load %arg9[%c3, %c0_36] : memref<16x16xf32, #tpu.memory_space<vmem>>, vector<1x16xf32>
      tpu.vector_store %arg9[%c3, %c0_36], %93 {strides = array<i32>} : memref<16x16xf32, #tpu.memory_space<vmem>>, vector<1x16xf32>,
      %95 = vector.extract_strided_slice %86 {offsets = [0, 64], sizes = [1, 16], strides = [1, 1]} : vector<1x256xf32> to vector<1x16xf32>
      %c4 = arith.constant 4 : index
      %c0_37 = arith.constant 0 : index
      %96 = vector.load %arg9[%c4, %c0_37] : memref<16x16xf32, #tpu.memory_space<vmem>>, vector<1x16xf32>
      tpu.vector_store %arg9[%c4, %c0_37], %95 {strides = array<i32>} : memref<16x16xf32, #tpu.memory_space<vmem>>, vector<1x16xf32>,
      %97 = vector.extract_strided_slice %86 {offsets = [0, 80], sizes = [1, 16], strides = [1, 1]} : vector<1x256xf32> to vector<1x16xf32>
      %c5 = arith.constant 5 : index
      %c0_38 = arith.constant 0 : index
      %98 = vector.load %arg9[%c5, %c0_38] : memref<16x16xf32, #tpu.memory_space<vmem>>, vector<1x16xf32>
      tpu.vector_store %arg9[%c5, %c0_38], %97 {strides = array<i32>} : memref<16x16xf32, #tpu.memory_space<vmem>>, vector<1x16xf32>,
      %99 = vector.extract_strided_slice %86 {offsets = [0, 96], sizes = [1, 16], strides = [1, 1]} : vector<1x256xf32> to vector<1x16xf32>
      %c6 = arith.constant 6 : index
      %c0_39 = arith.constant 0 : index
      %100 = vector.load %arg9[%c6, %c0_39] : memref<16x16xf32, #tpu.memory_space<vmem>>, vector<1x16xf32>
      tpu.vector_store %arg9[%c6, %c0_39], %99 {strides = array<i32>} : memref<16x16xf32, #tpu.memory_space<vmem>>, vector<1x16xf32>,
      %101 = vector.extract_strided_slice %86 {offsets = [0, 112], sizes = [1, 16], strides = [1, 1]} : vector<1x256xf32> to vector<1x16xf32>
      %c7 = arith.constant 7 : index
      %c0_40 = arith.constant 0 : index
      %102 = vector.load %arg9[%c7, %c0_40] : memref<16x16xf32, #tpu.memory_space<vmem>>, vector<1x16xf32>
      tpu.vector_store %arg9[%c7, %c0_40], %101 {strides = array<i32>} : memref<16x16xf32, #tpu.memory_space<vmem>>, vector<1x16xf32>,
      %103 = vector.extract_strided_slice %86 {offsets = [0, 128], sizes = [1, 16], strides = [1, 1]} : vector<1x256xf32> to vector<1x16xf32>
      %c8 = arith.constant 8 : index
      %c0_41 = arith.constant 0 : index
      %104 = vector.load %arg9[%c8, %c0_41] : memref<16x16xf32, #tpu.memory_space<vmem>>, vector<1x16xf32>
      tpu.vector_store %arg9[%c8, %c0_41], %103 {strides = array<i32>} : memref<16x16xf32, #tpu.memory_space<vmem>>, vector<1x16xf32>,
      %105 = vector.extract_strided_slice %86 {offsets = [0, 144], sizes = [1, 16], strides = [1, 1]} : vector<1x256xf32> to vector<1x16xf32>
      %c9 = arith.constant 9 : index
      %c0_42 = arith.constant 0 : index
      %106 = vector.load %arg9[%c9, %c0_42] : memref<16x16xf32, #tpu.memory_space<vmem>>, vector<1x16xf32>
      tpu.vector_store %arg9[%c9, %c0_42], %105 {strides = array<i32>} : memref<16x16xf32, #tpu.memory_space<vmem>>, vector<1x16xf32>,
      %107 = vector.extract_strided_slice %86 {offsets = [0, 160], sizes = [1, 16], strides = [1, 1]} : vector<1x256xf32> to vector<1x16xf32>
      %c10 = arith.constant 10 : index
      %c0_43 = arith.constant 0 : index
      %108 = vector.load %arg9[%c10, %c0_43] : memref<16x16xf32, #tpu.memory_space<vmem>>, vector<1x16xf32>
      tpu.vector_store %arg9[%c10, %c0_43], %107 {strides = array<i32>} : memref<16x16xf32, #tpu.memory_space<vmem>>, vector<1x16xf32>,
      %109 = vector.extract_strided_slice %86 {offsets = [0, 176], sizes = [1, 16], strides = [1, 1]} : vector<1x256xf32> to vector<1x16xf32>
      %c11 = arith.constant 11 : index
      %c0_44 = arith.constant 0 : index
      %110 = vector.load %arg9[%c11, %c0_44] : memref<16x16xf32, #tpu.memory_space<vmem>>, vector<1x16xf32>
      tpu.vector_store %arg9[%c11, %c0_44], %109 {strides = array<i32>} : memref<16x16xf32, #tpu.memory_space<vmem>>, vector<1x16xf32>,
      %111 = vector.extract_strided_slice %86 {offsets = [0, 192], sizes = [1, 16], strides = [1, 1]} : vector<1x256xf32> to vector<1x16xf32>
      %c12 = arith.constant 12 : index
      %c0_45 = arith.constant 0 : index
      %112 = vector.load %arg9[%c12, %c0_45] : memref<16x16xf32, #tpu.memory_space<vmem>>, vector<1x16xf32>
      tpu.vector_store %arg9[%c12, %c0_45], %111 {strides = array<i32>} : memref<16x16xf32, #tpu.memory_space<vmem>>, vector<1x16xf32>,
      %113 = vector.extract_strided_slice %86 {offsets = [0, 208], sizes = [1, 16], strides = [1, 1]} : vector<1x256xf32> to vector<1x16xf32>
      %c13 = arith.constant 13 : index
      %c0_46 = arith.constant 0 : index
      %114 = vector.load %arg9[%c13, %c0_46] : memref<16x16xf32, #tpu.memory_space<vmem>>, vector<1x16xf32>
      tpu.vector_store %arg9[%c13, %c0_46], %113 {strides = array<i32>} : memref<16x16xf32, #tpu.memory_space<vmem>>, vector<1x16xf32>,
      %115 = vector.extract_strided_slice %86 {offsets = [0, 224], sizes = [1, 16], strides = [1, 1]} : vector<1x256xf32> to vector<1x16xf32>
      %c14 = arith.constant 14 : index
      %c0_47 = arith.constant 0 : index
      %116 = vector.load %arg9[%c14, %c0_47] : memref<16x16xf32, #tpu.memory_space<vmem>>, vector<1x16xf32>
      tpu.vector_store %arg9[%c14, %c0_47], %115 {strides = array<i32>} : memref<16x16xf32, #tpu.memory_space<vmem>>, vector<1x16xf32>,
      %117 = vector.extract_strided_slice %86 {offsets = [0, 240], sizes = [1, 16], strides = [1, 1]} : vector<1x256xf32> to vector<1x16xf32>
      %c15 = arith.constant 15 : index
      %c0_48 = arith.constant 0 : index
      %118 = vector.load %arg9[%c15, %c0_48] : memref<16x16xf32, #tpu.memory_space<vmem>>, vector<1x16xf32>
      tpu.vector_store %arg9[%c15, %c0_48], %117 {strides = array<i32>} : memref<16x16xf32, #tpu.memory_space<vmem>>, vector<1x16xf32>,
      %c0_49 = arith.constant 0 : index
      %c0_50 = arith.constant 0 : index
      %119 = vector.load %arg5[%c0_49, %c0_50] : memref<64x16xf32, #tpu.memory_space<vmem>>, vector<64x16xf32>
      %c0_51 = arith.constant 0 : index
      %c0_52 = arith.constant 0 : index
      %120 = vector.load %arg9[%c0_51, %c0_52] : memref<16x16xf32, #tpu.memory_space<vmem>>, vector<16x16xf32>
      %cst_53 = arith.constant dense<0.000000e+00> : vector<64x16xf32>
      %121 = tpu.matmul %119, %120, %cst_53 {dimension_numbers = #tpu.dot_dimension_numbers<[1], [0], [0], [1], [0, 0, 1, 1], [], []>} : vector<64x16xf32>, vector<16x16xf32>, vector<64x16xf32> -> vector<64x16xf32>
      %c0_54 = arith.constant 0 : index
      %c0_55 = arith.constant 0 : index
      %122 = vector.load %arg6[%c0_54, %c0_55] : memref<16x64xf32, #tpu.memory_space<vmem>>, vector<16x64xf32>
      %cst_56 = arith.constant dense<0.000000e+00> : vector<64x64xf32>
      %123 = tpu.matmul %121, %122, %cst_56 {dimension_numbers = #tpu.dot_dimension_numbers<[1], [0], [0], [1], [0, 0, 1, 1], [], []>} : vector<64x16xf32>, vector<16x64xf32>, vector<64x64xf32> -> vector<64x64xf32>
      %c0_57 = arith.constant 0 : index
      %c0_58 = arith.constant 0 : index
      %c0_59 = arith.constant 0 : index
      %c0_60 = arith.constant 0 : index
      %124 = vector.load %arg7[%c0_57, %c0_58, %c0_59, %c0_60] : memref<1x1x64x64xf32, #tpu.memory_space<vmem>>, vector<1x1x64x64xf32>
      %125 = vector.shape_cast %124 : vector<1x1x64x64xf32> to vector<64x64xf32>
      %126 = vector.shape_cast %123 : vector<64x64xf32> to vector<1x1x64x64xf32>
      tpu.vector_store %arg7[%c0_57, %c0_58, %c0_59, %c0_60], %126 {strides = array<i32>} : memref<1x1x64x64xf32, #tpu.memory_space<vmem>>, vector<1x1x64x64xf32>,
    } else {
    }
    return
  }
  func.func @transform_0(%arg0: i32, %arg1: i32) -> i32 {
    %c0_i32 = arith.constant 0 : i32
    %c0_i32_0 = arith.constant 0 : i32
    return %c0_i32 : i32
  }
  func.func @transform_1(%arg0: i32, %arg1: i32) -> (i32, i32) {
    %c0_i32 = arith.constant 0 : i32
    %c0_i32_0 = arith.constant 0 : i32
    return %c0_i32, %arg1 : i32, i32
  }
  func.func @transform_2(%arg0: i32, %arg1: i32) -> (i32, i32, i32) {
    %c0_i32 = arith.constant 0 : i32
    %c0_i32_0 = arith.constant 0 : i32
    return %arg0, %arg1, %c0_i32 : i32, i32, i32
  }
  func.func @transform_3(%arg0: i32, %arg1: i32) -> (i32, i32) {
    %c0_i32 = arith.constant 0 : i32
    %c0_i32_0 = arith.constant 0 : i32
    %c0_i32_1 = arith.constant 0 : i32
    return %c0_i32, %c0_i32_0 : i32, i32
  }
  func.func @transform_4(%arg0: i32, %arg1: i32) -> (i32, i32) {
    %c0_i32 = arith.constant 0 : i32
    %c0_i32_0 = arith.constant 0 : i32
    %c0_i32_1 = arith.constant 0 : i32
    return %c0_i32, %c0_i32_0 : i32, i32
  }
  func.func @transform_5(%arg0: i32, %arg1: i32) -> (i32, i32, i32, i32) {
    %c0_i32 = arith.constant 0 : i32
    %c0_i32_0 = arith.constant 0 : i32
    %c0_i32_1 = arith.constant 0 : i32
    %c0_i32_2 = arith.constant 0 : i32
    return %arg0, %c0_i32, %c0_i32_0, %c0_i32_1 : i32, i32, i32, i32
  }
}

</mosaic_0001>

<llo_original>
// kernel: mask_classifier_forward.1
$region0: #{mask_classifier_forward.1}
  #allocation0 [shape = 'u32[]', space=smem, size = 0x4, offset = 0x4, fixed_abs, tag = 'smem constant byte address 0x4 - core index']
  #allocation1 [shape = 'u32[144,128]{1,0:T(1,128)}', space=vmem, size = 0x12000, scoped, tag = 'internal scratch']
  #allocation2 [shape = 'f32[9,256]{1,0:T(8,128)}', space=vmem, size = 0x4000, scoped, tag = 'scratch operand']
  #allocation3 [shape = 'f32[16,16]{1,0:T(8,128)}', space=vmem, size = 0x2000, scoped, tag = 'scratch operand']
  #allocation4 [shape = 'f32[1]{0:T(128)S(6)}', space=smem, size = 0x200, scoped, tag = 'scoped memory for mask_classifier_forward.1']
  %s0 = inlined_call_operand.<no memory space> [shape: f32[1], index: 0, kind: input, shape index: {}]
  %s1 = inlined_call_operand.vmem [shape: f32[9,8], index: 1, kind: input, shape index: {}]
  %s2 = inlined_call_operand.vmem [shape: f32[2,8,256], index: 2, kind: input, shape index: {}]
  %s3 = inlined_call_operand.vmem [shape: f32[64,16], index: 3, kind: input, shape index: {}]
  %s4 = inlined_call_operand.vmem [shape: f32[16,64], index: 4, kind: input, shape index: {}]
  %s5 = inlined_call_operand.hbm [shape: f32[2,1,64,64], index: 5, kind: output, shape index: {}]
  %s6 = sld [smem:[#allocation0]]
  $region61: #{mask_classifier_forward.1} parent=0
    _
  %s8 = ssub.s32 1, %s6
  %s9 = scalar_select 0, %s8, %s6
  %10 = sst [smem:[#allocation4]] %s0
  $region1: #{mask_classifier_forward.1} parent=0
    #allocation5 [shape = 'u8[65536]{0}', space=vmem, size = 0x10000, scoped, tag = 'output window, operand 0']
    #allocation6 [shape = 's32[2]{0}', space=sflag, size = 0x8, scoped, tag = 'scoped memory for mask_classifier_forward.1']
    %11 = vsyncpa [#allocation6], 0
    %s12 = scalar_lea.sflag [#allocation6], 1
    %13 = vsyncpa %s12, 0
    loop: start=0, step=1, limit=4
    $region2: #{mask_classifier_forward.1} parent=1 // loop_pre_header
      _
    $region3: #{mask_classifier_forward.1} parent=1 // loop_header
      %s15 = sphi 0, %s19
      %p16 = scmp.ge.s32.totalorder %s15, 4
      %s22 = sphi 0, %s34
      %s23 = sphi 0, %s30
      %s24 = sphi 0, %s22
      %s25 = sphi 0, %s23
      %s26 = sphi 0, %s24
      %s27 = sphi 0, %s25
      %s35 = sphi 0, %s35
      %s37 = sphi 0, %s35
      %s38 = sphi 0, %s37
      %s52 = sphi 0, %s38
      %s58 = sphi 0, %s60
      %s61 = sphi 0, %s58
      %s62 = sphi 0, %s61
      %s78 = sphi 0, %s62
      %s86 = sphi 0, %s88
      %s89 = sphi 0, %s86
      %s90 = sphi 0, %s89
      %s106 = sphi 0, %s90
      %s110 = sphi 0, %s110
      %s112 = sphi 0, %s110
      %s113 = sphi 0, %s112
      %s127 = sphi 0, %s113
      %s131 = sphi 0, %s131
      %s133 = sphi 0, %s131
      %s134 = sphi 0, %s133
      %s148 = sphi 0, %s134
      %s154 = sphi 0, %s156
      %s157 = sphi 0, %s154
      %s158 = sphi 0, %s157
      %s174 = sphi 0, %s158
    $region4: #{mask_classifier_forward.1} parent=1 // loop_header_branch
      %18 = sbr.rel (%p16) target = $region8
    $region5: #{mask_classifier_forward.1} parent=1 // loop_body
      %s20 = ssub.s32 %s15, 1
      %s21 = ssub.s32 %s15, 2
      %s28 = sadd.s32 1, %s23
      %p29 = scmp.ge.s32.totalorder %s28, 1
      %s30 = scalar_select %p29, 0, %s28
      %s31 = sadd.s32 1, %s22
      %s32 = scalar_select %p29, %s31, %s22
      %p33 = scmp.ge.s32.totalorder %s32, 2
      %s34 = scalar_select %p33, 0, %s32
      %s36 = sadd.s32 %s35, 1
      %p39 = scmp.eq.s32.totalorder %s15, 1
      %p40 = scmp.ne.s32.totalorder %s35, %s37
      %p41 = scmp.eq.s32.totalorder %s15, 0
      %p42 = por %p40, %p41
      %p43 = scmp.ne.s32.totalorder %s35, %s37
      %p44 = scmp.eq.s32.totalorder %s20, 1
      %p45 = por %p43, %p44
      %p46 = scmp.ne.s32.totalorder %s37, %s38
      %p47 = scmp.eq.s32.totalorder %s20, 0
      %p48 = por %p46, %p47
      %p49 = scmp.ne.s32.totalorder %s37, %s38
      %p50 = scmp.eq.s32.totalorder %s21, 1
      %p51 = por %p49, %p50
      %p53 = scmp.ne.s32.totalorder %s38, %s52
      %p54 = scmp.eq.s32.totalorder %s21, 0
      %p55 = por %p53, %p54
      %s56 = ssub.s32 %s23, %s30
      %p57 = scmp.eq.s32.totalorder %s56, 0
      %s59 = sadd.s32 %s58, 1
      %s60 = scalar_select %p57, %s58, %s59
      %p63 = pneg %p57
      %p64 = scmp.eq.s32.totalorder %s15, 1
      %p65 = por %p63, %p64
      %p66 = scmp.ne.s32.totalorder %s58, %s61
      %p67 = scmp.eq.s32.totalorder %s15, 0
      %p68 = por %p66, %p67
      %p69 = scmp.ne.s32.totalorder %s58, %s61
      %p70 = scmp.eq.s32.totalorder %s20, 1
      %p71 = por %p69, %p70
      %p72 = scmp.ne.s32.totalorder %s61, %s62
      %p73 = scmp.eq.s32.totalorder %s20, 0
      %p74 = por %p72, %p73
      %p75 = scmp.ne.s32.totalorder %s61, %s62
      %p76 = scmp.eq.s32.totalorder %s21, 1
      %p77 = por %p75, %p76
      %p79 = scmp.ne.s32.totalorder %s62, %s78
      %p80 = scmp.eq.s32.totalorder %s21, 0
      %p81 = por %p79, %p80
      %s82 = ssub.s32 %s22, %s34
      %s83 = ssub.s32 %s23, %s30
      %s84 = sor.u32 %s82, %s83
      %p85 = scmp.eq.s32.totalorder %s84, 0
      %s87 = sadd.s32 %s86, 1
      %s88 = scalar_select %p85, %s86, %s87
      %p91 = pneg %p85
      %p92 = scmp.eq.s32.totalorder %s15, 1
      %p93 = por %p91, %p92
      %p94 = scmp.ne.s32.totalorder %s86, %s89
      %p95 = scmp.eq.s32.totalorder %s15, 0
      %p96 = por %p94, %p95
      %p97 = scmp.ne.s32.totalorder %s86, %s89
      %p98 = scmp.eq.s32.totalorder %s20, 1
      %p99 = por %p97, %p98
      %p100 = scmp.ne.s32.totalorder %s89, %s90
      %p101 = scmp.eq.s32.totalorder %s20, 0
      %p102 = por %p100, %p101
      %p103 = scmp.ne.s32.totalorder %s89, %s90
      %p104 = scmp.eq.s32.totalorder %s21, 1
      %p105 = por %p103, %p104
      %p107 = scmp.ne.s32.totalorder %s90, %s106
      %p108 = scmp.eq.s32.totalorder %s21, 0
      %p109 = por %p107, %p108
      %s111 = sadd.s32 %s110, 1
      %p114 = scmp.eq.s32.totalorder %s15, 1
      %p115 = scmp.ne.s32.totalorder %s110, %s112
      %p116 = scmp.eq.s32.totalorder %s15, 0
      %p117 = por %p115, %p116
      %p118 = scmp.ne.s32.totalorder %s110, %s112
      %p119 = scmp.eq.s32.totalorder %s20, 1
      %p120 = por %p118, %p119
      %p121 = scmp.ne.s32.totalorder %s112, %s113
      %p122 = scmp.eq.s32.totalorder %s20, 0
      %p123 = por %p121, %p122
      %p124 = scmp.ne.s32.totalorder %s112, %s113
      %p125 = scmp.eq.s32.totalorder %s21, 1
      %p126 = por %p124, %p125
      %p128 = scmp.ne.s32.totalorder %s113, %s127
      %p129 = scmp.eq.s32.totalorder %s21, 0
      %p130 = por %p128, %p129
      %s132 = sadd.s32 %s131, 1
      %p135 = scmp.eq.s32.totalorder %s15, 1
      %p136 = scmp.ne.s32.totalorder %s131, %s133
      %p137 = scmp.eq.s32.totalorder %s15, 0
      %p138 = por %p136, %p137
      %p139 = scmp.ne.s32.totalorder %s131, %s133
      %p140 = scmp.eq.s32.totalorder %s20, 1
      %p141 = por %p139, %p140
      %p142 = scmp.ne.s32.totalorder %s133, %s134
      %p143 = scmp.eq.s32.totalorder %s20, 0
      %p144 = por %p142, %p143
      %p145 = scmp.ne.s32.totalorder %s133, %s134
      %p146 = scmp.eq.s32.totalorder %s21, 1
      %p147 = por %p145, %p146
      %p149 = scmp.ne.s32.totalorder %s134, %s148
      %p150 = scmp.eq.s32.totalorder %s21, 0
      %p151 = por %p149, %p150
      %s152 = ssub.s32 %s22, %s34
      %p153 = scmp.eq.s32.totalorder %s152, 0
      %s155 = sadd.s32 %s154, 1
      %s156 = scalar_select %p153, %s154, %s155
      %p159 = pneg %p153
      %p160 = scmp.eq.s32.totalorder %s15, 1
      %p161 = por %p159, %p160
      %p162 = scmp.ne.s32.totalorder %s154, %s157
      %p163 = scmp.eq.s32.totalorder %s15, 0
      %p164 = por %p162, %p163
      %p165 = scmp.ne.s32.totalorder %s154, %s157
      %p166 = scmp.eq.s32.totalorder %s20, 1
      %p167 = por %p165, %p166
      %p168 = scmp.ne.s32.totalorder %s157, %s158
      %p169 = scmp.eq.s32.totalorder %s20, 0
      %p170 = por %p168, %p169
      %p171 = scmp.ne.s32.totalorder %s157, %s158
      %p172 = scmp.eq.s32.totalorder %s21, 1
      %p173 = por %p171, %p172
      %p175 = scmp.ne.s32.totalorder %s158, %s174
      %p176 = scmp.eq.s32.totalorder %s21, 0
      %p177 = por %p175, %p176
      %p178 = scmp.le.s32.totalorder 1, %s15
      %p179 = scmp.lt.s32.totalorder %s15, 3
      %p180 = pnand %p178, %p179
      %p181 = pneg %p180
      // Predicated region
      $region9: #{mask_classifier_forward.1} parent=5 // pred_check
        _
      $region10: #{mask_classifier_forward.1} parent=5 // pred_check_branch
        %183 = sbr.rel (%p180) target = $region12
      $region11: #{mask_classifier_forward.1} parent=5 // pred_region
        %s184 = ssub.s32 %s15, 1
        // Predicated region
        $region13: #{mask_classifier_forward.1} parent=11 // pred_check
          %p185 = pneg %p48
        $region14: #{mask_classifier_forward.1} parent=11 // pred_check_branch
          %187 = sbr.rel (%p185) target = $region16
        $region15: #{mask_classifier_forward.1} parent=11 // pred_region
          _
        $region16: #{mask_classifier_forward.1} parent=11 // pred_fallthru
          _
        // Predicated region
        $region17: #{mask_classifier_forward.1} parent=11 // pred_check
          %p188 = pneg %p74
        $region18: #{mask_classifier_forward.1} parent=11 // pred_check_branch
          %190 = sbr.rel (%p188) target = $region20
        $region19: #{mask_classifier_forward.1} parent=11 // pred_region
          %p191 = scmp.lt.s32.totalorder %s25, 0
          %s192 = scalar_select %p191, %s25, 0
          %s193 = smul.addr %s192, 8
          %s194 = scalar_lea.vmem %s1, %s193
        $region20: #{mask_classifier_forward.1} parent=11 // pred_fallthru
          _
        // Predicated region
        $region21: #{mask_classifier_forward.1} parent=11 // pred_check
          %p195 = pneg %p123
        $region22: #{mask_classifier_forward.1} parent=11 // pred_check_branch
          %197 = sbr.rel (%p195) target = $region24
        $region23: #{mask_classifier_forward.1} parent=11 // pred_region
          _
        $region24: #{mask_classifier_forward.1} parent=11 // pred_fallthru
          _
        // Predicated region
        $region25: #{mask_classifier_forward.1} parent=11 // pred_check
          %p198 = pneg %p144
        $region26: #{mask_classifier_forward.1} parent=11 // pred_check_branch
          %200 = sbr.rel (%p198) target = $region28
        $region27: #{mask_classifier_forward.1} parent=11 // pred_region
          _
        $region28: #{mask_classifier_forward.1} parent=11 // pred_fallthru
          _
      $region12: #{mask_classifier_forward.1} parent=5 // pred_fallthru
        _
      %p201 = scmp.lt.s32.totalorder %s15, 2
      // Predicated region
      $region29: #{mask_classifier_forward.1} parent=5 // pred_check
        %p202 = pneg %p201
      $region30: #{mask_classifier_forward.1} parent=5 // pred_check_branch
        %204 = sbr.rel (%p202) target = $region32
      $region31: #{mask_classifier_forward.1} parent=5 // pred_region
        // Predicated region
        $region33: #{mask_classifier_forward.1} parent=31 // pred_check
          %p205 = pneg %p96
        $region34: #{mask_classifier_forward.1} parent=31 // pred_check_branch
          %207 = sbr.rel (%p205) target = $region36
        $region35: #{mask_classifier_forward.1} parent=31 // pred_region
          %p208 = scmp.lt.s32.totalorder %s22, 1
          %s209 = scalar_select %p208, %s22, 1
          %p210 = scmp.lt.s32.totalorder %s23, 0
          %s211 = scalar_select %p210, %s23, 0
          %s212 = smul.addr %s211, 2
          %s213 = smul.addr %s209, 2
          %s214 = sadd.s32 %s212, %s213
          %s215 = smul.addr %s214, 8
          %s216 = scalar_lea.vmem %s2, %s215
        $region36: #{mask_classifier_forward.1} parent=31 // pred_fallthru
          _
      $region32: #{mask_classifier_forward.1} parent=5 // pred_fallthru
        _
      %p217 = scmp.le.s32.totalorder 1, %s15
      %p218 = scmp.lt.s32.totalorder %s15, 3
      %p219 = pnand %p217, %p218
      %p220 = pneg %p219
      // Predicated region
      $region37: #{mask_classifier_forward.1} parent=5 // pred_check
        _
      $region38: #{mask_classifier_forward.1} parent=5 // pred_check_branch
        %222 = sbr.rel (%p219) target = $region40
      $region39: #{mask_classifier_forward.1} parent=5 // pred_region
        %s223 = ssub.s32 %s15, 1
        %p224 = pneg %p48
        %p225 = pneg %p45
        %p226 = scmp.lt.s32.totalorder %s25, 0
        %s227 = scalar_select %p226, %s25, 0
        %s228 = smul.addr %s227, 8
        %s229 = scalar_lea.vmem %s1, %s228
        %p230 = pneg %p74
        %p231 = pneg %p71
        %p232 = scmp.lt.s32.totalorder %s24, 1
        %s233 = scalar_select %p232, %s24, 1
        %p234 = scmp.lt.s32.totalorder %s25, 0
        %s235 = scalar_select %p234, %s25, 0
        %s236 = smul.addr %s235, 2
        %s237 = smul.addr %s233, 2
        %s238 = sadd.s32 %s236, %s237
        %s239 = smul.addr %s238, 8
        %s240 = scalar_lea.vmem %s2, %s239
        %p241 = pneg %p102
        %p242 = pneg %p99
        %p243 = pneg %p123
        %p244 = pneg %p120
        %p245 = pneg %p144
        %p246 = pneg %p141
        %p247 = pneg %p170
        %p248 = pneg %p167
        %s249 = sand.u32 %s157, 1
        %s250 = scalar_lea.sflag [#allocation6], %s249
        %s251 = sand.u32 %s157, 1
        %s252 = smul.addr %s251, 64
        %s253 = scalar_lea.vmem [#allocation5], %s252
        %p254 = scmp.lt.s32.totalorder %s25, 0
        %s255 = scalar_select %p254, %s25, 0
        %s256 = smul.addr %s255, 8
        %s257 = scalar_lea.vmem %s1, %s256
        %p258 = scmp.lt.s32.totalorder %s24, 1
        %s259 = scalar_select %p258, %s24, 1
        %p260 = scmp.lt.s32.totalorder %s25, 0
        %s261 = scalar_select %p260, %s25, 0
        %s262 = smul.addr %s261, 2
        %s263 = smul.addr %s259, 2
        %s264 = sadd.s32 %s262, %s263
        %s265 = smul.addr %s264, 8
        %s266 = scalar_lea.vmem %s2, %s265
        %v267 = vld [vmem:[%s257] sm:$0xff]
        %v268 = vld [vmem:[%s257 + $0x8] sm:$0x1]
        %v269 = vld [vmem:[%s266] sm:$0xff]
        %v270 = vld [vmem:[%s266 + $0x8] sm:$0xff]
        %vm271 = vcmask 64512
        %v273 = vsel %vm271, %v267, 0
        %v276 = vsel %vm271, %v268, 0
        %278 = vmatprep.subr.mxu0 0.0
        %279 = vmatpush1.msra.mxu0 0.0
        %280 = vmatprep.subr.mxu0 0.0
        %281 = vmatpush1.msra.mxu0 0.0
        %282 = vmatprep.subr.mxu0 0.0
        %283 = vmatpush1.msra.mxu0 0.0
        %284 = vmatprep.subr.mxu0 0.0
        %285 = vmatpush1.msra.mxu0 0.0
        %286 = vmatprep.subr.mxu0 0.0
        %287 = vmatpush1.msra.mxu0 0.0
        %288 = vmatprep.subr.mxu0 0.0
        %289 = vmatpush1.msra.mxu0 0.0
        %290 = vmatprep.subr.mxu0 0.0
        %291 = vmatpush1.msra.mxu0 0.0
        %292 = vmatprep.subr.mxu0 0.0
        %293 = vmatpush1.msra.mxu0 0.0
        %294 = vmatprep.subr.mxu0 0.0
        %295 = vmatpush1.msra.mxu0 0.0
        %296 = vmatprep.subr.mxu0 0.0
        %297 = vmatpush1.msra.mxu0 0.0
        %298 = vmatprep.subr.mxu0 0.0
        %299 = vmatpush1.msra.mxu0 0.0
        %300 = vmatprep.subr.mxu0 0.0
        %301 = vmatpush1.msra.mxu0 0.0
        %302 = vmatprep.subr.mxu0 0.0
        %303 = vmatpush1.msra.mxu0 0.0
        %304 = vmatprep.subr.mxu0 0.0
        %305 = vmatpush1.msra.mxu0 0.0
        %306 = vmatprep.subr.mxu0 0.0
        %307 = vmatpush1.msra.mxu0 0.0
        %308 = vmatprep.subr.mxu0 %v270
        %309 = vmatpush1.msra.mxu0 %v269
        %310 = vmatprep.subr.mxu0 0.0
        %311 = vmatpush2.msra.mxu0 0.0
        %312 = vmatprep.subr.mxu0 0.0
        %313 = vmatpush2.msra.mxu0 0.0
        %314 = vmatprep.subr.mxu0 0.0
        %315 = vmatpush2.msra.mxu0 0.0
        %316 = vmatprep.subr.mxu0 0.0
        %317 = vmatpush2.msra.mxu0 0.0
        %318 = vmatprep.subr.mxu0 0.0
        %319 = vmatpush2.msra.mxu0 0.0
        %320 = vmatprep.subr.mxu0 0.0
        %321 = vmatpush2.msra.mxu0 0.0
        %322 = vmatprep.subr.mxu0 0.0
        %323 = vmatpush2.msra.mxu0 0.0
        %324 = vmatprep.subr.mxu0 0.0
        %325 = vmatpush2.msra.mxu0 0.0
        %326 = vmatprep.subr.mxu0 0.0
        %327 = vmatpush2.msra.mxu0 0.0
        %328 = vmatprep.subr.mxu0 0.0
        %329 = vmatpush2.msra.mxu0 0.0
        %330 = vmatprep.subr.mxu0 0.0
        %331 = vmatpush2.msra.mxu0 0.0
        %332 = vmatprep.subr.mxu0 0.0
        %333 = vmatpush2.msra.mxu0 0.0
        %334 = vmatprep.subr.mxu0 0.0
        %335 = vmatpush2.msra.mxu0 0.0
        %336 = vmatprep.subr.mxu0 0.0
        %337 = vmatpush2.msra.mxu0 0.0
        %338 = vmatprep.subr.mxu0 0.0
        %339 = vmatpush2.msra.mxu0 0.0
        %340 = vmatprep.subr.mxu0 0.0
        %341 = vmatpush2.msra.mxu0 0.0
        %342 = vmatprep.mubr.f32.mxu0 0.0
        %343 = vmatmul.mubr.f32.gmra.mxu0 %v273
        %v344 = vpop.f32.mrf.mxu0
        %v345 = vadd.f32 0.0, %v344
        %v346 = vpop.f32.mrf.mxu0
        %v347 = vadd.f32 0.0, %v346
        %348 = vmatprep.mubr.f32.mxu0 0.0
        %349 = vmatmul.mubr.f32.gmra.mxu0 %v276
        %v350 = vpop.f32.mrf.mxu0
        %v351 = vadd.f32 0.0, %v350
        %v352 = vpop.f32.mrf.mxu0
        %v353 = vadd.f32 0.0, %v352
        %354 = vdwg.mxu0
        %p355 = scmp.eq.s32.totalorder %s25, 0
        // Predicated region
        $region41: #{mask_classifier_forward.1} parent=39 // pred_check
          %p356 = pneg %p355
        $region42: #{mask_classifier_forward.1} parent=39 // pred_check_branch
          %358 = sbr.rel (%p356) target = $region44
        $region43: #{mask_classifier_forward.1} parent=39 // pred_region
          %359 = vst [vmem:[#allocation2] sm:$0xff] 0.0
          %360 = vst [vmem:[#allocation2 + $0x8] sm:$0xff] 0.0
          %361 = vst [vmem:[#allocation2 + $0x10] sm:$0x1] 0.0
          %362 = vst [vmem:[#allocation2 + $0x18] sm:$0x1] 0.0
        $region44: #{mask_classifier_forward.1} parent=39 // pred_fallthru
          _
        %v363 = vld [vmem:[#allocation2] sm:$0xff]
        %v364 = vld [vmem:[#allocation2 + $0x8] sm:$0xff]
        %v365 = vld [vmem:[#allocation2 + $0x10] sm:$0x1]
        %v366 = vld [vmem:[#allocation2 + $0x18] sm:$0x1]
        %v367 = vadd.f32 %v363, %v345
        %v368 = vadd.f32 %v364, %v347
        %v369 = vadd.f32 %v365, %v351
        %v370 = vadd.f32 %v366, %v353
        %371 = vst [vmem:[#allocation2] sm:$0xff] %v367
        %372 = vst [vmem:[#allocation2 + $0x8] sm:$0xff] %v368
        %373 = vst [vmem:[#allocation2 + $0x10] sm:$0x1] %v369
        %374 = vst [vmem:[#allocation2 + $0x18] sm:$0x1] %v370
        // Predicated region
        $region45: #{mask_classifier_forward.1} parent=39 // pred_check
          %p375 = pneg %p355
        $region46: #{mask_classifier_forward.1} parent=39 // pred_check_branch
          %377 = sbr.rel (%p375) target = $region48
        $region47: #{mask_classifier_forward.1} parent=39 // pred_region
          %v378 = vld [vmem:[#allocation2] sm:$0xff]
          %v379 = vld [vmem:[#allocation2 + $0x8] sm:$0xff]
          %v380 = vld [vmem:[#allocation2 + $0x10] sm:$0x1]
          %v381 = vld [vmem:[#allocation2 + $0x18] sm:$0x1]
          %v382 = vlaneseq
          %v383 = vand.u32 %v382, 127
          %v384 = vadd.s32 %v383, 128
          %vm385 = vcmp.lt.s32.totalorder %v383, 0
          %v386 = vsub.s32 0, %v383
          %v387 = vsel %vm385, %v386, %v383
          %v388 = vshrl.u32 %v387, 4
          %v389 = vand.u32 %v387, 15
          %v390 = vsub.s32 0, %v389
          %v391 = vsel %vm385, %v390, %v389
          %vm392 = vcmp.lt.s32.totalorder %v384, 0
          %v393 = vsub.s32 0, %v384
          %v394 = vsel %vm392, %v393, %v384
          %v395 = vshrl.u32 %v394, 4
          %v396 = vand.u32 %v394, 15
          %v397 = vsub.s32 0, %v396
          %v398 = vsel %vm392, %v397, %v396
          %vm399 = vcmp.ne.s32.totalorder %v391, 0
          %vm400 = vcmp.ne.s32.totalorder %v398, 0
          %vm401 = vcmp.lt.s32.totalorder %v391, 0
          %vm402 = vcmp.lt.s32.totalorder %v398, 0
          %vm403 = vmand %vm401, %vm399
          %vm404 = vmand %vm402, %vm400
          %v405 = vadd.s32 %v391, 16
          %v406 = vadd.s32 %v398, 16
          %v407 = vsel %vm403, %v405, %v391
          %v408 = vsel %vm404, %v406, %v398
          %vm409 = vcmp.ge.s32.totalorder %v383, 16
          %vm410 = vcmp.ge.s32.totalorder %v384, 16
          %vm411 = vcmp.lt.s32.totalorder %v383, 240
          %vm412 = vcmp.lt.s32.totalorder %v384, 240
          %vm413 = vcmp.gt.s32.totalorder %v407, 0
          %vm414 = vcmp.gt.s32.totalorder %v408, 0
          %vm415 = vcmp.lt.s32.totalorder %v407, 15
          %vm416 = vcmp.lt.s32.totalorder %v408, 15
          %417 = vrot.lane.b32.xlu0 %v378, 17
          %v418 = vpop.permute.xlu0 %417
          %419 = vrot.lane.b32.xlu0 %v379, 17
          %v420 = vpop.permute.xlu0 %419
          %vm421 = vcmp.lt.s32.totalorder %v383, 17
          %v422 = vsel %vm421, %v418, %v420
          %v423 = vsel %vm421, %v420, %v418
          %vm424 = vmand %vm409, %vm413
          %vm425 = vmand %vm410, %vm414
          %v426 = vsel %vm424, %v423, 0.0
          %v427 = vsel %vm425, %v422, 0.0
          %v430 = vrot.slane %v426, 4
          %v431 = vrot.slane %v427, 4
          %v434 = vadd.f32 %v378, %v430
          %v435 = vadd.f32 %v379, %v431
          %v438 = vrot.slane %v378, 1
          %v439 = vrot.slane %v379, 1
          %442 = vrot.lane.b32.xlu0 %v438, 16
          %v443 = vpop.permute.xlu0 %442
          %444 = vrot.lane.b32.xlu0 %v439, 16
          %v445 = vpop.permute.xlu0 %444
          %vm446 = vcmp.lt.s32.totalorder %v383, 16
          %v447 = vsel %vm446, %v443, %v445
          %v448 = vsel %vm446, %v445, %v443
          %v449 = vsel %vm409, %v448, 0.0
          %v450 = vsel %vm410, %v447, 0.0
          %v453 = vrot.slane %v449, 4
          %v454 = vrot.slane %v450, 4
          %v457 = vadd.f32 %v434, %v453
          %v458 = vadd.f32 %v435, %v454
          %v459 = vrot.slane %v378, 2
          %v460 = vrot.slane %v379, 2
          %463 = vrot.lane.b32.xlu0 %v459, 15
          %v464 = vpop.permute.xlu0 %463
          %465 = vrot.lane.b32.xlu0 %v460, 15
          %v466 = vpop.permute.xlu0 %465
          %vm467 = vcmp.lt.s32.totalorder %v383, 15
          %v468 = vsel %vm467, %v464, %v466
          %v469 = vsel %vm467, %v466, %v464
          %vm470 = vmand %vm409, %vm415
          %vm471 = vmand %vm410, %vm416
          %v472 = vsel %vm470, %v469, 0.0
          %v473 = vsel %vm471, %v468, 0.0
          %v476 = vrot.slane %v472, 4
          %v477 = vrot.slane %v473, 4
          %v480 = vadd.f32 %v457, %v476
          %v481 = vadd.f32 %v458, %v477
          %v482 = vrot.slane %v378, 3
          %v483 = vrot.slane %v379, 3
          %486 = vrot.lane.b32.xlu0 %v482, 1
          %v487 = vpop.permute.xlu0 %486
          %488 = vrot.lane.b32.xlu0 %v483, 1
          %v489 = vpop.permute.xlu0 %488
          %vm490 = vcmp.lt.s32.totalorder %v383, 1
          %v491 = vsel %vm490, %v487, %v489
          %v492 = vsel %vm490, %v489, %v487
          %v493 = vsel %vm413, %v492, 0.0
          %v494 = vsel %vm414, %v491, 0.0
          %v497 = vrot.slane %v493, 4
          %v498 = vrot.slane %v494, 4
          %v501 = vadd.f32 %v480, %v497
          %v502 = vadd.f32 %v481, %v498
          %v503 = vrot.slane %v378, 5
          %v504 = vrot.slane %v379, 5
          %507 = vrot.lane.b32.xlu0 %v503, 127
          %v508 = vpop.permute.xlu0 %507
          %509 = vrot.lane.b32.xlu0 %v504, 127
          %v510 = vpop.permute.xlu0 %509
          %vm511 = vcmp.lt.s32.totalorder %v383, 127
          %v512 = vsel %vm511, %v508, %v510
          %v513 = vsel %vm511, %v510, %v508
          %v514 = vsel %vm415, %v512, 0.0
          %v515 = vsel %vm416, %v513, 0.0
          %v518 = vrot.slane %v514, 4
          %v519 = vrot.slane %v515, 4
          %v522 = vadd.f32 %v501, %v518
          %v523 = vadd.f32 %v502, %v519
          %v524 = vrot.slane %v378, 6
          %v525 = vrot.slane %v379, 6
          %528 = vrot.lane.b32.xlu0 %v524, 113
          %v529 = vpop.permute.xlu0 %528
          %530 = vrot.lane.b32.xlu0 %v525, 113
          %v531 = vpop.permute.xlu0 %530
          %vm532 = vcmp.lt.s32.totalorder %v383, 113
          %v533 = vsel %vm532, %v529, %v531
          %v534 = vsel %vm532, %v531, %v529
          %vm535 = vmand %vm411, %vm413
          %vm536 = vmand %vm412, %vm414
          %v537 = vsel %vm535, %v533, 0.0
          %v538 = vsel %vm536, %v534, 0.0
          %v541 = vrot.slane %v537, 4
          %v542 = vrot.slane %v538, 4
          %v545 = vadd.f32 %v522, %v541
          %v546 = vadd.f32 %v523, %v542
          %v547 = vrot.slane %v378, 7
          %v548 = vrot.slane %v379, 7
          %551 = vrot.lane.b32.xlu0 %v547, 112
          %v552 = vpop.permute.xlu0 %551
          %553 = vrot.lane.b32.xlu0 %v548, 112
          %v554 = vpop.permute.xlu0 %553
          %vm555 = vcmp.lt.s32.totalorder %v383, 112
          %v556 = vsel %vm555, %v552, %v554
          %v557 = vsel %vm555, %v554, %v552
          %v558 = vsel %vm411, %v556, 0.0
          %v559 = vsel %vm412, %v557, 0.0
          %v562 = vrot.slane %v558, 4
          %v563 = vrot.slane %v559, 4
          %v566 = vadd.f32 %v545, %v562
          %v567 = vadd.f32 %v546, %v563
          %568 = vrot.lane.b32.xlu0 %v380, 111
          %v569 = vpop.permute.xlu0 %568
          %570 = vrot.lane.b32.xlu0 %v381, 111
          %v571 = vpop.permute.xlu0 %570
          %vm572 = vcmp.lt.s32.totalorder %v383, 111
          %v573 = vsel %vm572, %v569, %v571
          %v574 = vsel %vm572, %v571, %v569
          %vm575 = vmand %vm411, %vm415
          %vm576 = vmand %vm412, %vm416
          %v577 = vsel %vm575, %v573, 0.0
          %v578 = vsel %vm576, %v574, 0.0
          %v581 = vrot.slane %v577, 4
          %v582 = vrot.slane %v578, 4
          %v585 = vadd.f32 %v566, %v581
          %v586 = vadd.f32 %v567, %v582
          %s587 = sld [smem:[#allocation4]]
          %v588 = vstv %s587
          %v589 = vadd.f32 %v585, %v588
          %v590 = vadd.f32 %v586, %v588
          %vm591 = vcmask 126980
          %592 = vst.msk [vmem:[#allocation3 - $0x4] sm:$0x10] %vm591, %v589
          %594 = vrot.lane.b32.xlu0 %v589, 112
          %v595 = vpop.permute.xlu0 %594
          %597 = vst.msk [vmem:[#allocation3 - $0x3] sm:$0x10] %vm591, %v595
          %598 = vrot.lane.b32.xlu0 %v589, 96
          %v599 = vpop.permute.xlu0 %598
          %601 = vst.msk [vmem:[#allocation3 - $0x2] sm:$0x10] %vm591, %v599
          %602 = vrot.lane.b32.xlu0 %v589, 80
          %v603 = vpop.permute.xlu0 %602
          %605 = vst.msk [vmem:[#allocation3 - $0x1] sm:$0x10] %vm591, %v603
          %606 = vrot.lane.b32.xlu0 %v589, 64
          %v607 = vpop.permute.xlu0 %606
          %609 = vst.msk [vmem:[#allocation3] sm:$0x10] %vm591, %v607
          %610 = vrot.lane.b32.xlu0 %v589, 48
          %v611 = vpop.permute.xlu0 %610
          %613 = vst.msk [vmem:[#allocation3 + $0x1] sm:$0x10] %vm591, %v611
          %614 = vrot.lane.b32.xlu0 %v589, 32
          %v615 = vpop.permute.xlu0 %614
          %617 = vst.msk [vmem:[#allocation3 + $0x2] sm:$0x10] %vm591, %v615
          %618 = vrot.lane.b32.xlu0 %v589, 16
          %v619 = vpop.permute.xlu0 %618
          %621 = vst.msk [vmem:[#allocation3 + $0x3] sm:$0x10] %vm591, %v619
          %622 = vst.msk [vmem:[#allocation3 + $0x4] sm:$0x10] %vm591, %v590
          %624 = vrot.lane.b32.xlu0 %v590, 112
          %v625 = vpop.permute.xlu0 %624
          %627 = vst.msk [vmem:[#allocation3 + $0x5] sm:$0x10] %vm591, %v625
          %628 = vrot.lane.b32.xlu0 %v590, 96
          %v629 = vpop.permute.xlu0 %628
          %631 = vst.msk [vmem:[#allocation3 + $0x6] sm:$0x10] %vm591, %v629
          %632 = vrot.lane.b32.xlu0 %v590, 80
          %v633 = vpop.permute.xlu0 %632
          %635 = vst.msk [vmem:[#allocation3 + $0x7] sm:$0x10] %vm591, %v633
          %636 = vrot.lane.b32.xlu0 %v590, 64
          %v637 = vpop.permute.xlu0 %636
          %639 = vst.msk [vmem:[#allocation3 + $0x8] sm:$0x10] %vm591, %v637
          %640 = vrot.lane.b32.xlu0 %v590, 48
          %v641 = vpop.permute.xlu0 %640
          %643 = vst.msk [vmem:[#allocation3 + $0x9] sm:$0x10] %vm591, %v641
          %644 = vrot.lane.b32.xlu0 %v590, 32
          %v645 = vpop.permute.xlu0 %644
          %647 = vst.msk [vmem:[#allocation3 + $0xa] sm:$0x10] %vm591, %v645
          %648 = vrot.lane.b32.xlu0 %v590, 16
          %v649 = vpop.permute.xlu0 %648
          %651 = vst.msk [vmem:[#allocation3 + $0xb] sm:$0x10] %vm591, %v649
          %v652 = vld [vmem:[%s3] sm:$0xff]
          %v653 = vld [vmem:[%s3 + $0x8] sm:$0xff]
          %v654 = vld [vmem:[%s3 + $0x10] sm:$0xff]
          %v655 = vld [vmem:[%s3 + $0x18] sm:$0xff]
          %v656 = vld [vmem:[%s3 + $0x20] sm:$0xff]
          %v657 = vld [vmem:[%s3 + $0x28] sm:$0xff]
          %v658 = vld [vmem:[%s3 + $0x30] sm:$0xff]
          %v659 = vld [vmem:[%s3 + $0x38] sm:$0xff]
          %v660 = vld [vmem:[#allocation3] sm:$0xff]
          %v661 = vld [vmem:[#allocation3 + $0x8] sm:$0xff]
          %vm662 = vcmask 130048
          %v664 = vsel %vm662, %v652, 0
          %v667 = vsel %vm662, %v653, 0
          %v670 = vsel %vm662, %v654, 0
          %v673 = vsel %vm662, %v655, 0
          %v676 = vsel %vm662, %v656, 0
          %v679 = vsel %vm662, %v657, 0
          %v682 = vsel %vm662, %v658, 0
          %v685 = vsel %vm662, %v659, 0
          %687 = vmatprep.subr.mxu0 0.0
          %688 = vmatpush1.msra.mxu0 0.0
          %689 = vmatprep.subr.mxu0 0.0
          %690 = vmatpush1.msra.mxu0 0.0
          %691 = vmatprep.subr.mxu0 0.0
          %692 = vmatpush1.msra.mxu0 0.0
          %693 = vmatprep.subr.mxu0 0.0
          %694 = vmatpush1.msra.mxu0 0.0
          %695 = vmatprep.subr.mxu0 0.0
          %696 = vmatpush1.msra.mxu0 0.0
          %697 = vmatprep.subr.mxu0 0.0
          %698 = vmatpush1.msra.mxu0 0.0
          %699 = vmatprep.subr.mxu0 0.0
          %700 = vmatpush1.msra.mxu0 0.0
          %701 = vmatprep.subr.mxu0 0.0
          %702 = vmatpush1.msra.mxu0 0.0
          %703 = vmatprep.subr.mxu0 0.0
          %704 = vmatpush1.msra.mxu0 0.0
          %705 = vmatprep.subr.mxu0 0.0
          %706 = vmatpush1.msra.mxu0 0.0
          %707 = vmatprep.subr.mxu0 0.0
          %708 = vmatpush1.msra.mxu0 0.0
          %709 = vmatprep.subr.mxu0 0.0
          %710 = vmatpush1.msra.mxu0 0.0
          %711 = vmatprep.subr.mxu0 0.0
          %712 = vmatpush1.msra.mxu0 0.0
          %713 = vmatprep.subr.mxu0 0.0
          %714 = vmatpush1.msra.mxu0 0.0
          %715 = vmatprep.subr.mxu0 0.0
          %716 = vmatpush1.msra.mxu0 %v661
          %717 = vmatprep.subr.mxu0 0.0
          %718 = vmatpush1.msra.mxu0 %v660
          %719 = vmatprep.subr.mxu0 0.0
          %720 = vmatpush2.msra.mxu0 0.0
          %721 = vmatprep.subr.mxu0 0.0
          %722 = vmatpush2.msra.mxu0 0.0
          %723 = vmatprep.subr.mxu0 0.0
          %724 = vmatpush2.msra.mxu0 0.0
          %725 = vmatprep.subr.mxu0 0.0
          %726 = vmatpush2.msra.mxu0 0.0
          %727 = vmatprep.subr.mxu0 0.0
          %728 = vmatpush2.msra.mxu0 0.0
          %729 = vmatprep.subr.mxu0 0.0
          %730 = vmatpush2.msra.mxu0 0.0
          %731 = vmatprep.subr.mxu0 0.0
          %732 = vmatpush2.msra.mxu0 0.0
          %733 = vmatprep.subr.mxu0 0.0
          %734 = vmatpush2.msra.mxu0 0.0
          %735 = vmatprep.subr.mxu0 0.0
          %736 = vmatpush2.msra.mxu0 0.0
          %737 = vmatprep.subr.mxu0 0.0
          %738 = vmatpush2.msra.mxu0 0.0
          %739 = vmatprep.subr.mxu0 0.0
          %740 = vmatpush2.msra.mxu0 0.0
          %741 = vmatprep.subr.mxu0 0.0
          %742 = vmatpush2.msra.mxu0 0.0
          %743 = vmatprep.subr.mxu0 0.0
          %744 = vmatpush2.msra.mxu0 0.0
          %745 = vmatprep.subr.mxu0 0.0
          %746 = vmatpush2.msra.mxu0 0.0
          %747 = vmatprep.subr.mxu0 0.0
          %748 = vmatpush2.msra.mxu0 0.0
          %749 = vmatprep.subr.mxu0 0.0
          %750 = vmatpush2.msra.mxu0 0.0
          %751 = vmatprep.mubr.f32.mxu0 0.0
          %752 = vmatmul.mubr.f32.gmra.mxu0 %v664
          %v753 = vpop.f32.mrf.mxu0
          %v754 = vadd.f32 0.0, %v753
          %v755 = vpop.f32.mrf.mxu0
          %756 = vmatprep.mubr.f32.mxu0 0.0
          %757 = vmatmul.mubr.f32.gmra.mxu0 %v667
          %v758 = vpop.f32.mrf.mxu0
          %v759 = vadd.f32 0.0, %v758
          %v760 = vpop.f32.mrf.mxu0
          %761 = vmatprep.mubr.f32.mxu0 0.0
          %762 = vmatmul.mubr.f32.gmra.mxu0 %v670
          %v763 = vpop.f32.mrf.mxu0
          %v764 = vadd.f32 0.0, %v763
          %v765 = vpop.f32.mrf.mxu0
          %766 = vmatprep.mubr.f32.mxu0 0.0
          %767 = vmatmul.mubr.f32.gmra.mxu0 %v673
          %v768 = vpop.f32.mrf.mxu0
          %v769 = vadd.f32 0.0, %v768
          %v770 = vpop.f32.mrf.mxu0
          %771 = vmatprep.mubr.f32.mxu0 0.0
          %772 = vmatmul.mubr.f32.gmra.mxu0 %v676
          %v773 = vpop.f32.mrf.mxu0
          %v774 = vadd.f32 0.0, %v773
          %v775 = vpop.f32.mrf.mxu0
          %776 = vmatprep.mubr.f32.mxu0 0.0
          %777 = vmatmul.mubr.f32.gmra.mxu0 %v679
          %v778 = vpop.f32.mrf.mxu0
          %v779 = vadd.f32 0.0, %v778
          %v780 = vpop.f32.mrf.mxu0
          %781 = vmatprep.mubr.f32.mxu0 0.0
          %782 = vmatmul.mubr.f32.gmra.mxu0 %v682
          %v783 = vpop.f32.mrf.mxu0
          %v784 = vadd.f32 0.0, %v783
          %v785 = vpop.f32.mrf.mxu0
          %786 = vmatprep.mubr.f32.mxu0 0.0
          %787 = vmatmul.mubr.f32.gmra.mxu0 %v685
          %v788 = vpop.f32.mrf.mxu0
          %v789 = vadd.f32 0.0, %v788
          %v790 = vpop.f32.mrf.mxu0
          %791 = vdwg.mxu0
          %v792 = vld [vmem:[%s4] sm:$0xff]
          %v793 = vld [vmem:[%s4 + $0x8] sm:$0xff]
          %v795 = vsel %vm662, %v754, 0
          %v798 = vsel %vm662, %v759, 0
          %v801 = vsel %vm662, %v764, 0
          %v804 = vsel %vm662, %v769, 0
          %v807 = vsel %vm662, %v774, 0
          %v810 = vsel %vm662, %v779, 0
          %v813 = vsel %vm662, %v784, 0
          %v816 = vsel %vm662, %v789, 0
          %818 = vmatprep.subr.mxu0 0.0
          %819 = vmatpush1.msra.mxu0 0.0
          %820 = vmatprep.subr.mxu0 0.0
          %821 = vmatpush1.msra.mxu0 0.0
          %822 = vmatprep.subr.mxu0 0.0
          %823 = vmatpush1.msra.mxu0 0.0
          %824 = vmatprep.subr.mxu0 0.0
          %825 = vmatpush1.msra.mxu0 0.0
          %826 = vmatprep.subr.mxu0 0.0
          %827 = vmatpush1.msra.mxu0 0.0
          %828 = vmatprep.subr.mxu0 0.0
          %829 = vmatpush1.msra.mxu0 0.0
          %830 = vmatprep.subr.mxu0 0.0
          %831 = vmatpush1.msra.mxu0 0.0
          %832 = vmatprep.subr.mxu0 0.0
          %833 = vmatpush1.msra.mxu0 0.0
          %834 = vmatprep.subr.mxu0 0.0
          %835 = vmatpush1.msra.mxu0 0.0
          %836 = vmatprep.subr.mxu0 0.0
          %837 = vmatpush1.msra.mxu0 0.0
          %838 = vmatprep.subr.mxu0 0.0
          %839 = vmatpush1.msra.mxu0 0.0
          %840 = vmatprep.subr.mxu0 0.0
          %841 = vmatpush1.msra.mxu0 0.0
          %842 = vmatprep.subr.mxu0 0.0
          %843 = vmatpush1.msra.mxu0 0.0
          %844 = vmatprep.subr.mxu0 0.0
          %845 = vmatpush1.msra.mxu0 0.0
          %846 = vmatprep.subr.mxu0 0.0
          %847 = vmatpush1.msra.mxu0 %v793
          %848 = vmatprep.subr.mxu0 0.0
          %849 = vmatpush1.msra.mxu0 %v792
          %850 = vmatprep.subr.mxu0 0.0
          %851 = vmatpush2.msra.mxu0 0.0
          %852 = vmatprep.subr.mxu0 0.0
          %853 = vmatpush2.msra.mxu0 0.0
          %854 = vmatprep.subr.mxu0 0.0
          %855 = vmatpush2.msra.mxu0 0.0
          %856 = vmatprep.subr.mxu0 0.0
          %857 = vmatpush2.msra.mxu0 0.0
          %858 = vmatprep.subr.mxu0 0.0
          %859 = vmatpush2.msra.mxu0 0.0
          %860 = vmatprep.subr.mxu0 0.0
          %861 = vmatpush2.msra.mxu0 0.0
          %862 = vmatprep.subr.mxu0 0.0
          %863 = vmatpush2.msra.mxu0 0.0
          %864 = vmatprep.subr.mxu0 0.0
          %865 = vmatpush2.msra.mxu0 0.0
          %866 = vmatprep.subr.mxu0 0.0
          %867 = vmatpush2.msra.mxu0 0.0
          %868 = vmatprep.subr.mxu0 0.0
          %869 = vmatpush2.msra.mxu0 0.0
          %870 = vmatprep.subr.mxu0 0.0
          %871 = vmatpush2.msra.mxu0 0.0
          %872 = vmatprep.subr.mxu0 0.0
          %873 = vmatpush2.msra.mxu0 0.0
          %874 = vmatprep.subr.mxu0 0.0
          %875 = vmatpush2.msra.mxu0 0.0
          %876 = vmatprep.subr.mxu0 0.0
          %877 = vmatpush2.msra.mxu0 0.0
          %878 = vmatprep.subr.mxu0 0.0
          %879 = vmatpush2.msra.mxu0 0.0
          %880 = vmatprep.subr.mxu0 0.0
          %881 = vmatpush2.msra.mxu0 0.0
          %882 = vmatprep.mubr.f32.mxu0 0.0
          %883 = vmatmul.mubr.f32.gmra.mxu0 %v795
          %v884 = vpop.f32.mrf.mxu0
          %v885 = vadd.f32 0.0, %v884
          %v886 = vpop.f32.mrf.mxu0
          %887 = vmatprep.mubr.f32.mxu0 0.0
          %888 = vmatmul.mubr.f32.gmra.mxu0 %v798
          %v889 = vpop.f32.mrf.mxu0
          %v890 = vadd.f32 0.0, %v889
          %v891 = vpop.f32.mrf.mxu0
          %892 = vmatprep.mubr.f32.mxu0 0.0
          %893 = vmatmul.mubr.f32.gmra.mxu0 %v801
          %v894 = vpop.f32.mrf.mxu0
          %v895 = vadd.f32 0.0, %v894
          %v896 = vpop.f32.mrf.mxu0
          %897 = vmatprep.mubr.f32.mxu0 0.0
          %898 = vmatmul.mubr.f32.gmra.mxu0 %v804
          %v899 = vpop.f32.mrf.mxu0
          %v900 = vadd.f32 0.0, %v899
          %v901 = vpop.f32.mrf.mxu0
          %902 = vmatprep.mubr.f32.mxu0 0.0
          %903 = vmatmul.mubr.f32.gmra.mxu0 %v807
          %v904 = vpop.f32.mrf.mxu0
          %v905 = vadd.f32 0.0, %v904
          %v906 = vpop.f32.mrf.mxu0
          %907 = vmatprep.mubr.f32.mxu0 0.0
          %908 = vmatmul.mubr.f32.gmra.mxu0 %v810
          %v909 = vpop.f32.mrf.mxu0
          %v910 = vadd.f32 0.0, %v909
          %v911 = vpop.f32.mrf.mxu0
          %912 = vmatprep.mubr.f32.mxu0 0.0
          %913 = vmatmul.mubr.f32.gmra.mxu0 %v813
          %v914 = vpop.f32.mrf.mxu0
          %v915 = vadd.f32 0.0, %v914
          %v916 = vpop.f32.mrf.mxu0
          %917 = vmatprep.mubr.f32.mxu0 0.0
          %918 = vmatmul.mubr.f32.gmra.mxu0 %v816
          %v919 = vpop.f32.mrf.mxu0
          %v920 = vadd.f32 0.0, %v919
          %v921 = vpop.f32.mrf.mxu0
          %922 = vdwg.mxu0
          %vm923 = vcmask 523264
          %924 = vst.msk [vmem:[%s253] sm:$0xff] %vm923, %v885
          %925 = vst.msk [vmem:[%s253 + $0x8] sm:$0xff] %vm923, %v890
          %926 = vst.msk [vmem:[%s253 + $0x10] sm:$0xff] %vm923, %v895
          %927 = vst.msk [vmem:[%s253 + $0x18] sm:$0xff] %vm923, %v900
          %928 = vst.msk [vmem:[%s253 + $0x20] sm:$0xff] %vm923, %v905
          %929 = vst.msk [vmem:[%s253 + $0x28] sm:$0xff] %vm923, %v910
          %930 = vst.msk [vmem:[%s253 + $0x30] sm:$0xff] %vm923, %v915
          %931 = vst.msk [vmem:[%s253 + $0x38] sm:$0xff] %vm923, %v920
        $region48: #{mask_classifier_forward.1} parent=39 // pred_fallthru
          _
        %s932 = sand.u32 %s157, 1
        %s933 = scalar_lea.sflag [#allocation6], %s932
        %s934 = sand.u32 %s157, 1
        %s935 = smul.addr %s934, 64
        %s936 = scalar_lea.vmem [#allocation5], %s935
        // Predicated region
        $region49: #{mask_classifier_forward.1} parent=39 // pred_check
          %p937 = pneg %p167
        $region50: #{mask_classifier_forward.1} parent=39 // pred_check_branch
          %939 = sbr.rel (%p937) target = $region52
        $region51: #{mask_classifier_forward.1} parent=39 // pred_region
          %s941 = ssub.s32 1024, 1024
          %942 = vsyncadd %s933, %s941
          %s943 = smul.addr %s24, 8
          %s944 = smul.addr %s943, 128
          %s945 = scalar_lea.hbm %s5, %s944
          %s946 = sshll.u32 %s936, 4
          %s947 = int_to_ptr.vmem [resolvable:$true] %s946
          %952 = dma.vmem_to_hbm [thread:$0]  %s947, 1024, %s945, %s933, 128, 128, 8
        $region52: #{mask_classifier_forward.1} parent=39 // pred_fallthru
          _
      $region40: #{mask_classifier_forward.1} parent=5 // pred_fallthru
        _
      %p953 = scmp.le.s32.totalorder 2, %s15
      // Predicated region
      $region53: #{mask_classifier_forward.1} parent=5 // pred_check
        %p954 = pneg %p953
      $region54: #{mask_classifier_forward.1} parent=5 // pred_check_branch
        %956 = sbr.rel (%p954) target = $region56
      $region55: #{mask_classifier_forward.1} parent=5 // pred_region
        %s957 = ssub.s32 %s15, 2
        // Predicated region
        $region57: #{mask_classifier_forward.1} parent=55 // pred_check
          %p958 = pneg %p173
        $region58: #{mask_classifier_forward.1} parent=55 // pred_check_branch
          %960 = sbr.rel (%p958) target = $region60
        $region59: #{mask_classifier_forward.1} parent=55 // pred_region
          %s961 = sand.u32 %s158, 1
          %s962 = scalar_lea.sflag [#allocation6], %s961
          %s963 = sand.u32 %s158, 1
          %s964 = smul.addr %s963, 64
          %s965 = scalar_lea.vmem [#allocation5], %s964
          %966 = dma.done %s962, 1024
        $region60: #{mask_classifier_forward.1} parent=55 // pred_fallthru
          _
      $region56: #{mask_classifier_forward.1} parent=5 // pred_fallthru
        _
    $region6: #{mask_classifier_forward.1} parent=1 // loop_footer
      %s19 = sadd.s32 1, %s15
    $region7: #{mask_classifier_forward.1} parent=1 // loop_footer_branch
      %14 = sbr.rel target = $region3
    $region8: #{mask_classifier_forward.1} parent=1 // loop_exit
      _
    %967 = vsyncpa [#allocation6], 1
    %s968 = scalar_lea.sflag [#allocation6], 1
    %969 = vsyncpa %s968, 1

</llo_original>
